<compile_context>
chip_gen: v7x
topology: tpu7x:2x2x1
jax: 0.10.0
libtpu: 0.0.40
codegen_flags: <defaults>
</compile_context>

<pallas_src>
import functools

import jax
import jax.numpy as jnp
from jax import lax
from jax.experimental import pallas as pl
from jax.experimental.pallas import tpu as pltpu


def _vit_sdpa_kernel(x_ref, w_ref, b_ref, o_ref, *, head_dim: int):
    """One grid step = one (head group, batch block).

    x_ref : (Bt, S, D)           VMEM  (model dtype)
    w_ref : (D, 3 * Hg * HD)     VMEM  bf16, head-interleaved [q|k|v] columns
    b_ref : (1, 3 * Hg * HD)     VMEM  f32 (scale pre-folded into q part)
    o_ref : (Bt, S, Hg * HD)     VMEM
    """
    Bt, S, D = x_ref.shape
    Gw = w_ref.shape[1]
    HD = head_dim
    Hg = Gw // (3 * HD)

    # Fused QKV projection: one MXU pass, bf16 operands, f32 accumulation.
    x2d = x_ref[...].reshape(Bt * S, D).astype(jnp.bfloat16)
    qkv = jnp.dot(x2d, w_ref[...], preferred_element_type=jnp.float32) + b_ref[...]

    # One wide, lane-dense cast of the whole projected block; the per-head
    # q/k/v slices below come straight out of this bf16 block.
    qkv_bf = qkv.astype(jnp.bfloat16).reshape(Bt, S, Gw)

    for b in range(Bt):
        qkv_b = qkv_bf[b]                                  # (S, Gw) bf16
        for h in range(Hg):
            base = h * 3 * HD
            q = qkv_b[:, base:base + HD]                   # scale already folded in
            k = qkv_b[:, base + HD:base + 2 * HD]
            v = qkv_b[:, base + 2 * HD:base + 3 * HD]

            # scores = q @ k.T (contract head_dim of both; no explicit transpose)
            s = lax.dot_general(
                q, k,
                dimension_numbers=(((1,), (1,)), ((), ())),
                preferred_element_type=jnp.float32)        # (S, S) f32

            # Softmax statistics in f32 (matches torch's dtype=float32 softmax).
            m = jnp.max(s, axis=-1, keepdims=True)
            p = jnp.exp(s - m)
            inv = pl.reciprocal(jnp.sum(p, axis=-1, keepdims=True), approx=True)

            # Deferred normalization: scale the (S, HD) context, not the
            # (S, S) probabilities (S*HD VPU multiplies instead of S*S).
            ctx = jnp.dot(p.astype(jnp.bfloat16), v,
                          preferred_element_type=jnp.float32) * inv   # (S, HD)

            # Store each head's context immediately (o_ref is VMEM); this
            # bounds vreg liveness across the fully-unrolled batch/head loops.
            o_ref[b, :, h * HD:(h + 1) * HD] = ctx.astype(o_ref.dtype)


def vit_sdpa_self_attention(hidden_state, wq, bq, wk, bk, wv, bv, *,
                            num_heads: int,
                            block_batch: int | None = None,
                            num_head_groups: int = 1):
    """hidden_state: (B, S, D). Weights: (D, D) stored as (in, out). Biases: (D,)."""
    B, S, D = hidden_state.shape
    assert D % num_heads == 0
    head_dim = D // num_heads
    scale = float(head_dim) ** -0.5

    if block_batch is None:
        block_batch = 1
        for cand in (2, 1):   # small cap: keeps double-buffered x/out within VMEM
            if cand <= B and B % cand == 0:
                block_batch = cand
                break
    assert B % block_batch == 0

    assert num_heads % num_head_groups == 0
    heads_per_group = num_heads // num_head_groups
    out_width = heads_per_group * head_dim
    group_width = 3 * out_width
    if num_head_groups > 1:
        assert out_width % 128 == 0, "head-group width must be lane aligned"

    # Fused, head-interleaved QKV weight: columns per head are [q | k | v],
    # with the softmax scale pre-folded into the q columns and q bias.
    # Weight is cast to bf16 at the call boundary (half the DMA bytes / VMEM);
    # bias stays f32, accumulation in-kernel is f32.
    wq_s = (wq * scale).reshape(D, num_heads, head_dim)
    wk_r = wk.reshape(D, num_heads, head_dim)
    wv_r = wv.reshape(D, num_heads, head_dim)
    w_fused = jnp.stack([wq_s, wk_r, wv_r], axis=2).reshape(D, 3 * D)
    w_fused = w_fused.astype(jnp.bfloat16)

    bq_s = (bq * scale).reshape(num_heads, head_dim)
    bk_r = bk.reshape(num_heads, head_dim)
    bv_r = bv.reshape(num_heads, head_dim)
    b_fused = jnp.stack([bq_s, bk_r, bv_r], axis=1).reshape(1, 3 * D)
    b_fused = b_fused.astype(jnp.float32)

    kernel = functools.partial(_vit_sdpa_kernel, head_dim=head_dim)

    # Grid: head groups OUTER, batch blocks INNER.  With batch innermost the
    # weight block index is constant across consecutive steps, so each group's
    # weight is DMA'd once and stays VMEM-resident while only the small x/out
    # blocks stream.  With num_head_groups == 1 (default) the full fused
    # weight is fetched exactly once for the whole launch.
    grid = (num_head_groups, B // block_batch)

    # Explicit scoped-VMEM budget (v5e's default is only 16 MiB): rough
    # estimate of double-buffered blocks + f32 intermediates, clamped to
    # [32 MiB, 64 MiB] (64 MiB = v7x physical VMEM per TensorCore).
    itemsize = jnp.dtype(hidden_state.dtype).itemsize
    x_blk = block_batch * S * D * itemsize
    out_blk = block_batch * S * out_width * itemsize
    w_blk = D * group_width * 2                      # bf16
    b_blk = group_width * 4
    interm = block_batch * S * group_width * 4 + 2 * S * S * 4
    vmem_bytes = 2 * (x_blk + out_blk + w_blk + b_blk) + interm
    vmem_limit = int(min(max(2 * vmem_bytes, 32 * 1024 * 1024), 64 * 1024 * 1024))

    return pl.pallas_call(
        kernel,
        out_shape=jax.ShapeDtypeStruct((B, S, D), hidden_state.dtype),
        grid_spec=pltpu.PrefetchScalarGridSpec(
            num_scalar_prefetch=0,
            grid=grid,
            in_specs=[
                pl.BlockSpec((block_batch, S, D), lambda gi, bi: (bi, 0, 0)),
                pl.BlockSpec((D, group_width), lambda gi, bi: (0, gi)),
                pl.BlockSpec((1, group_width), lambda gi, bi: (0, gi)),
            ],
            out_specs=pl.BlockSpec((block_batch, S, out_width),
                                   lambda gi, bi: (bi, 0, gi)),
        ),
        compiler_params=pltpu.CompilerParams(
            dimension_semantics=("parallel", "parallel"),
            vmem_limit_bytes=vmem_limit),
    )(hidden_state, w_fused, b_fused)


def _reference(hidden_state, wq, bq, wk, bk, wv, bv, *, num_heads):
    """Pure-JAX (f32) reference mirroring the PyTorch forward in eval mode."""
    B, S, D = hidden_state.shape
    hd = D // num_heads
    q = hidden_state @ wq + bq
    k = hidden_state @ wk + bk
    v = hidden_state @ wv + bv
    q = q.reshape(B, S, num_heads, hd).transpose(0, 2, 1, 3)   # B H S hd
    k = k.reshape(B, S, num_heads, hd).transpose(0, 2, 3, 1)   # B H hd S
    v = v.reshape(B, S, num_heads, hd).transpose(0, 2, 1, 3)   # B H S hd
    att = (q @ k) * (hd ** -0.5)
    att = jax.nn.softmax(att.astype(jnp.float32), axis=-1).astype(att.dtype)
    out = att @ v                                              # B H S hd
    return out.transpose(0, 2, 1, 3).reshape(B, S, D)


def _run_case(key, B, S, D, H, **kw):
    kx, kq, kk, kv, kbq, kbk, kbv = jax.random.split(key, 7)
    x = jax.random.normal(kx, (B, S, D), dtype=jnp.float32)
    init = 0.02  # ViTConfig.initializer_range
    wq = init * jax.random.normal(kq, (D, D), dtype=jnp.float32)
    wk = init * jax.random.normal(kk, (D, D), dtype=jnp.float32)
    wv = init * jax.random.normal(kv, (D, D), dtype=jnp.float32)
    bq = init * jax.random.normal(kbq, (D,), dtype=jnp.float32)
    bk = init * jax.random.normal(kbk, (D,), dtype=jnp.float32)
    bv = init * jax.random.normal(kbv, (D,), dtype=jnp.float32)

    out = vit_sdpa_self_attention(x, wq, bq, wk, bk, wv, bv, num_heads=H, **kw)
    out = jax.block_until_ready(out)
    ref = _reference(x, wq, bq, wk, bk, wv, bv, num_heads=H)
    assert out.shape == (B, S, D)
    # bf16 matmul operands (f32 accumulation) => relaxed tolerance vs f32 ref.
    assert jnp.allclose(out, ref, atol=2e-2, rtol=2e-2), "mismatch vs reference"


if __name__ == "__main__":
    key = jax.random.PRNGKey(0)
    k1, k2 = jax.random.split(key)

    # Small, ViT-consistent shapes: hidden=32, heads=4 (head_dim=8),
    # batch=2, patches(seq)=8.  Single resident head group, grid (1, 1).
    _run_case(k1, B=2, S=8, D=32, H=4)

    # Exercise the 2-D grid (head groups x batch blocks, batch innermost):
    # head_dim=128 keeps head-group blocks lane-aligned -> grid (2, 2).
    _run_case(k2, B=2, S=8, D=256, H=2, block_batch=1, num_head_groups=2)

    print("KERNEL_OK")
</pallas_src>

<mosaic_0001>
module attributes {stable_mosaic.version = 11 : i64} {
  func.func @_vit_sdpa_kernel(%arg0: i32, %arg1: i32, %arg2: memref<2x8x32xf32, #tpu.memory_space<vmem>>, %arg3: memref<32x96xbf16, #tpu.memory_space<vmem>>, %arg4: memref<1x96xf32, #tpu.memory_space<vmem>>, %arg5: memref<2x8x32xf32, #tpu.memory_space<vmem>>) attributes {dimension_semantics = [#tpu.dimension_semantics<parallel>, #tpu.dimension_semantics<parallel>], iteration_bounds = array<i64: 1, 1>, scalar_prefetch = 0 : i64, scratch_operands = 0 : i64, tpu.core_type = #tpu.core_type<tc>, window_params = [{transform_indices = @transform_0, window_bounds = array<i64: 2, 8, 32>}, {transform_indices = @transform_1, window_bounds = array<i64: 32, 96>}, {transform_indices = @transform_2, window_bounds = array<i64: 1, 96>}, {transform_indices = @transform_3, window_bounds = array<i64: 2, 8, 32>}]} {
    %c0 = arith.constant 0 : index
    %c0_0 = arith.constant 0 : index
    %c0_1 = arith.constant 0 : index
    %0 = vector.load %arg2[%c0, %c0_0, %c0_1] : memref<2x8x32xf32, #tpu.memory_space<vmem>>, vector<2x8x32xf32>
    %1 = vector.shape_cast %0 : vector<2x8x32xf32> to vector<16x32xf32>
    %2 = arith.truncf %1 : vector<16x32xf32> to vector<16x32xbf16>
    %c0_2 = arith.constant 0 : index
    %c0_3 = arith.constant 0 : index
    %3 = vector.load %arg3[%c0_2, %c0_3] : memref<32x96xbf16, #tpu.memory_space<vmem>>, vector<32x96xbf16>
    %cst = arith.constant dense<0.000000e+00> : vector<16x96xf32>
    %4 = tpu.matmul %2, %3, %cst {dimension_numbers = #tpu.dot_dimension_numbers<[1], [0], [0], [1], [0, 0, 1, 1], [], []>} : vector<16x32xbf16>, vector<32x96xbf16>, vector<16x96xf32> -> vector<16x96xf32>
    %c0_4 = arith.constant 0 : index
    %c0_5 = arith.constant 0 : index
    %5 = vector.load %arg4[%c0_4, %c0_5] : memref<1x96xf32, #tpu.memory_space<vmem>>, vector<1x96xf32>
    %6 = vector.broadcast %5 : vector<1x96xf32> to vector<16x96xf32>
    %7 = arith.addf %4, %6 : vector<16x96xf32>
    %8 = arith.truncf %7 : vector<16x96xf32> to vector<16x96xbf16>
    %9 = vector.shape_cast %8 : vector<16x96xbf16> to vector<2x8x96xbf16>
    %10 = vector.extract_strided_slice %9 {offsets = [0, 0, 0], sizes = [1, 8, 96], strides = [1, 1, 1]} : vector<2x8x96xbf16> to vector<1x8x96xbf16>
    %11 = vector.shape_cast %10 : vector<1x8x96xbf16> to vector<8x96xbf16>
    %12 = vector.extract_strided_slice %11 {offsets = [0, 0], sizes = [8, 8], strides = [1, 1]} : vector<8x96xbf16> to vector<8x8xbf16>
    %13 = vector.extract_strided_slice %11 {offsets = [0, 8], sizes = [8, 8], strides = [1, 1]} : vector<8x96xbf16> to vector<8x8xbf16>
    %14 = vector.extract_strided_slice %11 {offsets = [0, 16], sizes = [8, 8], strides = [1, 1]} : vector<8x96xbf16> to vector<8x8xbf16>
    %cst_6 = arith.constant dense<0.000000e+00> : vector<8x8xf32>
    %15 = tpu.matmul %12, %13, %cst_6 {dimension_numbers = #tpu.dot_dimension_numbers<[1], [1], [0], [0], [0, 0, 1, 0], [], []>} : vector<8x8xbf16>, vector<8x8xbf16>, vector<8x8xf32> -> vector<8x8xf32>
    %cst_7 = arith.constant dense<0xFF800000> : vector<8xf32>
    %16 = vector.multi_reduction <maximumf>, %15, %cst_7 [1] : vector<8x8xf32> to vector<8xf32>
    %17 = vector.shape_cast %16 : vector<8xf32> to vector<8x1xf32>
    %18 = vector.broadcast %17 : vector<8x1xf32> to vector<8x8xf32>
    %19 = arith.subf %15, %18 : vector<8x8xf32>
    %20 = math.exp %19 : vector<8x8xf32>
    %cst_8 = arith.constant dense<0.000000e+00> : vector<8xf32>
    %21 = vector.multi_reduction <add>, %20, %cst_8 [1] : vector<8x8xf32> to vector<8xf32>
    %22 = vector.shape_cast %21 : vector<8xf32> to vector<8x1xf32>
    %23 = tpu.reciprocal %22 {approx = true} : vector<8x1xf32> -> vector<8x1xf32>
    %24 = arith.truncf %20 : vector<8x8xf32> to vector<8x8xbf16>
    %cst_9 = arith.constant dense<0.000000e+00> : vector<8x8xf32>
    %25 = tpu.matmul %24, %14, %cst_9 {dimension_numbers = #tpu.dot_dimension_numbers<[1], [0], [0], [1], [0, 0, 1, 1], [], []>} : vector<8x8xbf16>, vector<8x8xbf16>, vector<8x8xf32> -> vector<8x8xf32>
    %26 = vector.broadcast %23 : vector<8x1xf32> to vector<8x8xf32>
    %27 = arith.mulf %25, %26 : vector<8x8xf32>
    %c0_10 = arith.constant 0 : index
    %c0_11 = arith.constant 0 : index
    %c0_12 = arith.constant 0 : index
    %28 = vector.load %arg5[%c0_10, %c0_11, %c0_12] : memref<2x8x32xf32, #tpu.memory_space<vmem>>, vector<1x8x8xf32>
    %29 = vector.shape_cast %28 : vector<1x8x8xf32> to vector<8x8xf32>
    %30 = vector.shape_cast %27 : vector<8x8xf32> to vector<1x8x8xf32>
    tpu.vector_store %arg5[%c0_10, %c0_11, %c0_12], %30 {strides = array<i32>} : memref<2x8x32xf32, #tpu.memory_space<vmem>>, vector<1x8x8xf32>,
    %31 = vector.extract_strided_slice %11 {offsets = [0, 24], sizes = [8, 8], strides = [1, 1]} : vector<8x96xbf16> to vector<8x8xbf16>
    %32 = vector.extract_strided_slice %11 {offsets = [0, 32], sizes = [8, 8], strides = [1, 1]} : vector<8x96xbf16> to vector<8x8xbf16>
    %33 = vector.extract_strided_slice %11 {offsets = [0, 40], sizes = [8, 8], strides = [1, 1]} : vector<8x96xbf16> to vector<8x8xbf16>
    %cst_13 = arith.constant dense<0.000000e+00> : vector<8x8xf32>
    %34 = tpu.matmul %31, %32, %cst_13 {dimension_numbers = #tpu.dot_dimension_numbers<[1], [1], [0], [0], [0, 0, 1, 0], [], []>} : vector<8x8xbf16>, vector<8x8xbf16>, vector<8x8xf32> -> vector<8x8xf32>
    %cst_14 = arith.constant dense<0xFF800000> : vector<8xf32>
    %35 = vector.multi_reduction <maximumf>, %34, %cst_14 [1] : vector<8x8xf32> to vector<8xf32>
    %36 = vector.shape_cast %35 : vector<8xf32> to vector<8x1xf32>
    %37 = vector.broadcast %36 : vector<8x1xf32> to vector<8x8xf32>
    %38 = arith.subf %34, %37 : vector<8x8xf32>
    %39 = math.exp %38 : vector<8x8xf32>
    %cst_15 = arith.constant dense<0.000000e+00> : vector<8xf32>
    %40 = vector.multi_reduction <add>, %39, %cst_15 [1] : vector<8x8xf32> to vector<8xf32>
    %41 = vector.shape_cast %40 : vector<8xf32> to vector<8x1xf32>
    %42 = tpu.reciprocal %41 {approx = true} : vector<8x1xf32> -> vector<8x1xf32>
    %43 = arith.truncf %39 : vector<8x8xf32> to vector<8x8xbf16>
    %cst_16 = arith.constant dense<0.000000e+00> : vector<8x8xf32>
    %44 = tpu.matmul %43, %33, %cst_16 {dimension_numbers = #tpu.dot_dimension_numbers<[1], [0], [0], [1], [0, 0, 1, 1], [], []>} : vector<8x8xbf16>, vector<8x8xbf16>, vector<8x8xf32> -> vector<8x8xf32>
    %45 = vector.broadcast %42 : vector<8x1xf32> to vector<8x8xf32>
    %46 = arith.mulf %44, %45 : vector<8x8xf32>
    %c0_17 = arith.constant 0 : index
    %c0_18 = arith.constant 0 : index
    %c8 = arith.constant 8 : index
    %47 = vector.load %arg5[%c0_17, %c0_18, %c8] : memref<2x8x32xf32, #tpu.memory_space<vmem>>, vector<1x8x8xf32>
    %48 = vector.shape_cast %47 : vector<1x8x8xf32> to vector<8x8xf32>
    %49 = vector.shape_cast %46 : vector<8x8xf32> to vector<1x8x8xf32>
    tpu.vector_store %arg5[%c0_17, %c0_18, %c8], %49 {strides = array<i32>} : memref<2x8x32xf32, #tpu.memory_space<vmem>>, vector<1x8x8xf32>,
    %50 = vector.extract_strided_slice %11 {offsets = [0, 48], sizes = [8, 8], strides = [1, 1]} : vector<8x96xbf16> to vector<8x8xbf16>
    %51 = vector.extract_strided_slice %11 {offsets = [0, 56], sizes = [8, 8], strides = [1, 1]} : vector<8x96xbf16> to vector<8x8xbf16>
    %52 = vector.extract_strided_slice %11 {offsets = [0, 64], sizes = [8, 8], strides = [1, 1]} : vector<8x96xbf16> to vector<8x8xbf16>
    %cst_19 = arith.constant dense<0.000000e+00> : vector<8x8xf32>
    %53 = tpu.matmul %50, %51, %cst_19 {dimension_numbers = #tpu.dot_dimension_numbers<[1], [1], [0], [0], [0, 0, 1, 0], [], []>} : vector<8x8xbf16>, vector<8x8xbf16>, vector<8x8xf32> -> vector<8x8xf32>
    %cst_20 = arith.constant dense<0xFF800000> : vector<8xf32>
    %54 = vector.multi_reduction <maximumf>, %53, %cst_20 [1] : vector<8x8xf32> to vector<8xf32>
    %55 = vector.shape_cast %54 : vector<8xf32> to vector<8x1xf32>
    %56 = vector.broadcast %55 : vector<8x1xf32> to vector<8x8xf32>
    %57 = arith.subf %53, %56 : vector<8x8xf32>
    %58 = math.exp %57 : vector<8x8xf32>
    %cst_21 = arith.constant dense<0.000000e+00> : vector<8xf32>
    %59 = vector.multi_reduction <add>, %58, %cst_21 [1] : vector<8x8xf32> to vector<8xf32>
    %60 = vector.shape_cast %59 : vector<8xf32> to vector<8x1xf32>
    %61 = tpu.reciprocal %60 {approx = true} : vector<8x1xf32> -> vector<8x1xf32>
    %62 = arith.truncf %58 : vector<8x8xf32> to vector<8x8xbf16>
    %cst_22 = arith.constant dense<0.000000e+00> : vector<8x8xf32>
    %63 = tpu.matmul %62, %52, %cst_22 {dimension_numbers = #tpu.dot_dimension_numbers<[1], [0], [0], [1], [0, 0, 1, 1], [], []>} : vector<8x8xbf16>, vector<8x8xbf16>, vector<8x8xf32> -> vector<8x8xf32>
    %64 = vector.broadcast %61 : vector<8x1xf32> to vector<8x8xf32>
    %65 = arith.mulf %63, %64 : vector<8x8xf32>
    %c0_23 = arith.constant 0 : index
    %c0_24 = arith.constant 0 : index
    %c16 = arith.constant 16 : index
    %66 = vector.load %arg5[%c0_23, %c0_24, %c16] : memref<2x8x32xf32, #tpu.memory_space<vmem>>, vector<1x8x8xf32>
    %67 = vector.shape_cast %66 : vector<1x8x8xf32> to vector<8x8xf32>
    %68 = vector.shape_cast %65 : vector<8x8xf32> to vector<1x8x8xf32>
    tpu.vector_store %arg5[%c0_23, %c0_24, %c16], %68 {strides = array<i32>} : memref<2x8x32xf32, #tpu.memory_space<vmem>>, vector<1x8x8xf32>,
    %69 = vector.extract_strided_slice %11 {offsets = [0, 72], sizes = [8, 8], strides = [1, 1]} : vector<8x96xbf16> to vector<8x8xbf16>
    %70 = vector.extract_strided_slice %11 {offsets = [0, 80], sizes = [8, 8], strides = [1, 1]} : vector<8x96xbf16> to vector<8x8xbf16>
    %71 = vector.extract_strided_slice %11 {offsets = [0, 88], sizes = [8, 8], strides = [1, 1]} : vector<8x96xbf16> to vector<8x8xbf16>
    %cst_25 = arith.constant dense<0.000000e+00> : vector<8x8xf32>
    %72 = tpu.matmul %69, %70, %cst_25 {dimension_numbers = #tpu.dot_dimension_numbers<[1], [1], [0], [0], [0, 0, 1, 0], [], []>} : vector<8x8xbf16>, vector<8x8xbf16>, vector<8x8xf32> -> vector<8x8xf32>
    %cst_26 = arith.constant dense<0xFF800000> : vector<8xf32>
    %73 = vector.multi_reduction <maximumf>, %72, %cst_26 [1] : vector<8x8xf32> to vector<8xf32>
    %74 = vector.shape_cast %73 : vector<8xf32> to vector<8x1xf32>
    %75 = vector.broadcast %74 : vector<8x1xf32> to vector<8x8xf32>
    %76 = arith.subf %72, %75 : vector<8x8xf32>
    %77 = math.exp %76 : vector<8x8xf32>
    %cst_27 = arith.constant dense<0.000000e+00> : vector<8xf32>
    %78 = vector.multi_reduction <add>, %77, %cst_27 [1] : vector<8x8xf32> to vector<8xf32>
    %79 = vector.shape_cast %78 : vector<8xf32> to vector<8x1xf32>
    %80 = tpu.reciprocal %79 {approx = true} : vector<8x1xf32> -> vector<8x1xf32>
    %81 = arith.truncf %77 : vector<8x8xf32> to vector<8x8xbf16>
    %cst_28 = arith.constant dense<0.000000e+00> : vector<8x8xf32>
    %82 = tpu.matmul %81, %71, %cst_28 {dimension_numbers = #tpu.dot_dimension_numbers<[1], [0], [0], [1], [0, 0, 1, 1], [], []>} : vector<8x8xbf16>, vector<8x8xbf16>, vector<8x8xf32> -> vector<8x8xf32>
    %83 = vector.broadcast %80 : vector<8x1xf32> to vector<8x8xf32>
    %84 = arith.mulf %82, %83 : vector<8x8xf32>
    %c0_29 = arith.constant 0 : index
    %c0_30 = arith.constant 0 : index
    %c24 = arith.constant 24 : index
    %85 = vector.load %arg5[%c0_29, %c0_30, %c24] : memref<2x8x32xf32, #tpu.memory_space<vmem>>, vector<1x8x8xf32>
    %86 = vector.shape_cast %85 : vector<1x8x8xf32> to vector<8x8xf32>
    %87 = vector.shape_cast %84 : vector<8x8xf32> to vector<1x8x8xf32>
    tpu.vector_store %arg5[%c0_29, %c0_30, %c24], %87 {strides = array<i32>} : memref<2x8x32xf32, #tpu.memory_space<vmem>>, vector<1x8x8xf32>,
    %88 = vector.extract_strided_slice %9 {offsets = [1, 0, 0], sizes = [1, 8, 96], strides = [1, 1, 1]} : vector<2x8x96xbf16> to vector<1x8x96xbf16>
    %89 = vector.shape_cast %88 : vector<1x8x96xbf16> to vector<8x96xbf16>
    %90 = vector.extract_strided_slice %89 {offsets = [0, 0], sizes = [8, 8], strides = [1, 1]} : vector<8x96xbf16> to vector<8x8xbf16>
    %91 = vector.extract_strided_slice %89 {offsets = [0, 8], sizes = [8, 8], strides = [1, 1]} : vector<8x96xbf16> to vector<8x8xbf16>
    %92 = vector.extract_strided_slice %89 {offsets = [0, 16], sizes = [8, 8], strides = [1, 1]} : vector<8x96xbf16> to vector<8x8xbf16>
    %cst_31 = arith.constant dense<0.000000e+00> : vector<8x8xf32>
    %93 = tpu.matmul %90, %91, %cst_31 {dimension_numbers = #tpu.dot_dimension_numbers<[1], [1], [0], [0], [0, 0, 1, 0], [], []>} : vector<8x8xbf16>, vector<8x8xbf16>, vector<8x8xf32> -> vector<8x8xf32>
    %cst_32 = arith.constant dense<0xFF800000> : vector<8xf32>
    %94 = vector.multi_reduction <maximumf>, %93, %cst_32 [1] : vector<8x8xf32> to vector<8xf32>
    %95 = vector.shape_cast %94 : vector<8xf32> to vector<8x1xf32>
    %96 = vector.broadcast %95 : vector<8x1xf32> to vector<8x8xf32>
    %97 = arith.subf %93, %96 : vector<8x8xf32>
    %98 = math.exp %97 : vector<8x8xf32>
    %cst_33 = arith.constant dense<0.000000e+00> : vector<8xf32>
    %99 = vector.multi_reduction <add>, %98, %cst_33 [1] : vector<8x8xf32> to vector<8xf32>
    %100 = vector.shape_cast %99 : vector<8xf32> to vector<8x1xf32>
    %101 = tpu.reciprocal %100 {approx = true} : vector<8x1xf32> -> vector<8x1xf32>
    %102 = arith.truncf %98 : vector<8x8xf32> to vector<8x8xbf16>
    %cst_34 = arith.constant dense<0.000000e+00> : vector<8x8xf32>
    %103 = tpu.matmul %102, %92, %cst_34 {dimension_numbers = #tpu.dot_dimension_numbers<[1], [0], [0], [1], [0, 0, 1, 1], [], []>} : vector<8x8xbf16>, vector<8x8xbf16>, vector<8x8xf32> -> vector<8x8xf32>
    %104 = vector.broadcast %101 : vector<8x1xf32> to vector<8x8xf32>
    %105 = arith.mulf %103, %104 : vector<8x8xf32>
    %c1 = arith.constant 1 : index
    %c0_35 = arith.constant 0 : index
    %c0_36 = arith.constant 0 : index
    %106 = vector.load %arg5[%c1, %c0_35, %c0_36] : memref<2x8x32xf32, #tpu.memory_space<vmem>>, vector<1x8x8xf32>
    %107 = vector.shape_cast %106 : vector<1x8x8xf32> to vector<8x8xf32>
    %108 = vector.shape_cast %105 : vector<8x8xf32> to vector<1x8x8xf32>
    tpu.vector_store %arg5[%c1, %c0_35, %c0_36], %108 {strides = array<i32>} : memref<2x8x32xf32, #tpu.memory_space<vmem>>, vector<1x8x8xf32>,
    %109 = vector.extract_strided_slice %89 {offsets = [0, 24], sizes = [8, 8], strides = [1, 1]} : vector<8x96xbf16> to vector<8x8xbf16>
    %110 = vector.extract_strided_slice %89 {offsets = [0, 32], sizes = [8, 8], strides = [1, 1]} : vector<8x96xbf16> to vector<8x8xbf16>
    %111 = vector.extract_strided_slice %89 {offsets = [0, 40], sizes = [8, 8], strides = [1, 1]} : vector<8x96xbf16> to vector<8x8xbf16>
    %cst_37 = arith.constant dense<0.000000e+00> : vector<8x8xf32>
    %112 = tpu.matmul %109, %110, %cst_37 {dimension_numbers = #tpu.dot_dimension_numbers<[1], [1], [0], [0], [0, 0, 1, 0], [], []>} : vector<8x8xbf16>, vector<8x8xbf16>, vector<8x8xf32> -> vector<8x8xf32>
    %cst_38 = arith.constant dense<0xFF800000> : vector<8xf32>
    %113 = vector.multi_reduction <maximumf>, %112, %cst_38 [1] : vector<8x8xf32> to vector<8xf32>
    %114 = vector.shape_cast %113 : vector<8xf32> to vector<8x1xf32>
    %115 = vector.broadcast %114 : vector<8x1xf32> to vector<8x8xf32>
    %116 = arith.subf %112, %115 : vector<8x8xf32>
    %117 = math.exp %116 : vector<8x8xf32>
    %cst_39 = arith.constant dense<0.000000e+00> : vector<8xf32>
    %118 = vector.multi_reduction <add>, %117, %cst_39 [1] : vector<8x8xf32> to vector<8xf32>
    %119 = vector.shape_cast %118 : vector<8xf32> to vector<8x1xf32>
    %120 = tpu.reciprocal %119 {approx = true} : vector<8x1xf32> -> vector<8x1xf32>
    %121 = arith.truncf %117 : vector<8x8xf32> to vector<8x8xbf16>
    %cst_40 = arith.constant dense<0.000000e+00> : vector<8x8xf32>
    %122 = tpu.matmul %121, %111, %cst_40 {dimension_numbers = #tpu.dot_dimension_numbers<[1], [0], [0], [1], [0, 0, 1, 1], [], []>} : vector<8x8xbf16>, vector<8x8xbf16>, vector<8x8xf32> -> vector<8x8xf32>
    %123 = vector.broadcast %120 : vector<8x1xf32> to vector<8x8xf32>
    %124 = arith.mulf %122, %123 : vector<8x8xf32>
    %c1_41 = arith.constant 1 : index
    %c0_42 = arith.constant 0 : index
    %c8_43 = arith.constant 8 : index
    %125 = vector.load %arg5[%c1_41, %c0_42, %c8_43] : memref<2x8x32xf32, #tpu.memory_space<vmem>>, vector<1x8x8xf32>
    %126 = vector.shape_cast %125 : vector<1x8x8xf32> to vector<8x8xf32>
    %127 = vector.shape_cast %124 : vector<8x8xf32> to vector<1x8x8xf32>
    tpu.vector_store %arg5[%c1_41, %c0_42, %c8_43], %127 {strides = array<i32>} : memref<2x8x32xf32, #tpu.memory_space<vmem>>, vector<1x8x8xf32>,
    %128 = vector.extract_strided_slice %89 {offsets = [0, 48], sizes = [8, 8], strides = [1, 1]} : vector<8x96xbf16> to vector<8x8xbf16>
    %129 = vector.extract_strided_slice %89 {offsets = [0, 56], sizes = [8, 8], strides = [1, 1]} : vector<8x96xbf16> to vector<8x8xbf16>
    %130 = vector.extract_strided_slice %89 {offsets = [0, 64], sizes = [8, 8], strides = [1, 1]} : vector<8x96xbf16> to vector<8x8xbf16>
    %cst_44 = arith.constant dense<0.000000e+00> : vector<8x8xf32>
    %131 = tpu.matmul %128, %129, %cst_44 {dimension_numbers = #tpu.dot_dimension_numbers<[1], [1], [0], [0], [0, 0, 1, 0], [], []>} : vector<8x8xbf16>, vector<8x8xbf16>, vector<8x8xf32> -> vector<8x8xf32>
    %cst_45 = arith.constant dense<0xFF800000> : vector<8xf32>
    %132 = vector.multi_reduction <maximumf>, %131, %cst_45 [1] : vector<8x8xf32> to vector<8xf32>
    %133 = vector.shape_cast %132 : vector<8xf32> to vector<8x1xf32>
    %134 = vector.broadcast %133 : vector<8x1xf32> to vector<8x8xf32>
    %135 = arith.subf %131, %134 : vector<8x8xf32>
    %136 = math.exp %135 : vector<8x8xf32>
    %cst_46 = arith.constant dense<0.000000e+00> : vector<8xf32>
    %137 = vector.multi_reduction <add>, %136, %cst_46 [1] : vector<8x8xf32> to vector<8xf32>
    %138 = vector.shape_cast %137 : vector<8xf32> to vector<8x1xf32>
    %139 = tpu.reciprocal %138 {approx = true} : vector<8x1xf32> -> vector<8x1xf32>
    %140 = arith.truncf %136 : vector<8x8xf32> to vector<8x8xbf16>
    %cst_47 = arith.constant dense<0.000000e+00> : vector<8x8xf32>
    %141 = tpu.matmul %140, %130, %cst_47 {dimension_numbers = #tpu.dot_dimension_numbers<[1], [0], [0], [1], [0, 0, 1, 1], [], []>} : vector<8x8xbf16>, vector<8x8xbf16>, vector<8x8xf32> -> vector<8x8xf32>
    %142 = vector.broadcast %139 : vector<8x1xf32> to vector<8x8xf32>
    %143 = arith.mulf %141, %142 : vector<8x8xf32>
    %c1_48 = arith.constant 1 : index
    %c0_49 = arith.constant 0 : index
    %c16_50 = arith.constant 16 : index
    %144 = vector.load %arg5[%c1_48, %c0_49, %c16_50] : memref<2x8x32xf32, #tpu.memory_space<vmem>>, vector<1x8x8xf32>
    %145 = vector.shape_cast %144 : vector<1x8x8xf32> to vector<8x8xf32>
    %146 = vector.shape_cast %143 : vector<8x8xf32> to vector<1x8x8xf32>
    tpu.vector_store %arg5[%c1_48, %c0_49, %c16_50], %146 {strides = array<i32>} : memref<2x8x32xf32, #tpu.memory_space<vmem>>, vector<1x8x8xf32>,
    %147 = vector.extract_strided_slice %89 {offsets = [0, 72], sizes = [8, 8], strides = [1, 1]} : vector<8x96xbf16> to vector<8x8xbf16>
    %148 = vector.extract_strided_slice %89 {offsets = [0, 80], sizes = [8, 8], strides = [1, 1]} : vector<8x96xbf16> to vector<8x8xbf16>
    %149 = vector.extract_strided_slice %89 {offsets = [0, 88], sizes = [8, 8], strides = [1, 1]} : vector<8x96xbf16> to vector<8x8xbf16>
    %cst_51 = arith.constant dense<0.000000e+00> : vector<8x8xf32>
    %150 = tpu.matmul %147, %148, %cst_51 {dimension_numbers = #tpu.dot_dimension_numbers<[1], [1], [0], [0], [0, 0, 1, 0], [], []>} : vector<8x8xbf16>, vector<8x8xbf16>, vector<8x8xf32> -> vector<8x8xf32>
    %cst_52 = arith.constant dense<0xFF800000> : vector<8xf32>
    %151 = vector.multi_reduction <maximumf>, %150, %cst_52 [1] : vector<8x8xf32> to vector<8xf32>
    %152 = vector.shape_cast %151 : vector<8xf32> to vector<8x1xf32>
    %153 = vector.broadcast %152 : vector<8x1xf32> to vector<8x8xf32>
    %154 = arith.subf %150, %153 : vector<8x8xf32>
    %155 = math.exp %154 : vector<8x8xf32>
    %cst_53 = arith.constant dense<0.000000e+00> : vector<8xf32>
    %156 = vector.multi_reduction <add>, %155, %cst_53 [1] : vector<8x8xf32> to vector<8xf32>
    %157 = vector.shape_cast %156 : vector<8xf32> to vector<8x1xf32>
    %158 = tpu.reciprocal %157 {approx = true} : vector<8x1xf32> -> vector<8x1xf32>
    %159 = arith.truncf %155 : vector<8x8xf32> to vector<8x8xbf16>
    %cst_54 = arith.constant dense<0.000000e+00> : vector<8x8xf32>
    %160 = tpu.matmul %159, %149, %cst_54 {dimension_numbers = #tpu.dot_dimension_numbers<[1], [0], [0], [1], [0, 0, 1, 1], [], []>} : vector<8x8xbf16>, vector<8x8xbf16>, vector<8x8xf32> -> vector<8x8xf32>
    %161 = vector.broadcast %158 : vector<8x1xf32> to vector<8x8xf32>
    %162 = arith.mulf %160, %161 : vector<8x8xf32>
    %c1_55 = arith.constant 1 : index
    %c0_56 = arith.constant 0 : index
    %c24_57 = arith.constant 24 : index
    %163 = vector.load %arg5[%c1_55, %c0_56, %c24_57] : memref<2x8x32xf32, #tpu.memory_space<vmem>>, vector<1x8x8xf32>
    %164 = vector.shape_cast %163 : vector<1x8x8xf32> to vector<8x8xf32>
    %165 = vector.shape_cast %162 : vector<8x8xf32> to vector<1x8x8xf32>
    tpu.vector_store %arg5[%c1_55, %c0_56, %c24_57], %165 {strides = array<i32>} : memref<2x8x32xf32, #tpu.memory_space<vmem>>, vector<1x8x8xf32>,
    return
  }
  func.func @transform_0(%arg0: i32, %arg1: i32) -> (i32, i32, i32) {
    %c0_i32 = arith.constant 0 : i32
    %c0_i32_0 = arith.constant 0 : i32
    %c0_i32_1 = arith.constant 0 : i32
    return %arg1, %c0_i32, %c0_i32_0 : i32, i32, i32
  }
  func.func @transform_1(%arg0: i32, %arg1: i32) -> (i32, i32) {
    %c0_i32 = arith.constant 0 : i32
    %c0_i32_0 = arith.constant 0 : i32
    return %c0_i32, %arg0 : i32, i32
  }
  func.func @transform_2(%arg0: i32, %arg1: i32) -> (i32, i32) {
    %c0_i32 = arith.constant 0 : i32
    %c0_i32_0 = arith.constant 0 : i32
    return %c0_i32, %arg0 : i32, i32
  }
  func.func @transform_3(%arg0: i32, %arg1: i32) -> (i32, i32, i32) {
    %c0_i32 = arith.constant 0 : i32
    %c0_i32_0 = arith.constant 0 : i32
    return %arg1, %c0_i32, %arg0 : i32, i32, i32
  }
}

</mosaic_0001>

<llo_original>
// kernel: tpu_custom_call.1
$region0: #{tpu_custom_call.1}
  #allocation0 [shape = 'u32[]', space=smem, size = 0x4, offset = 0x4, fixed_abs, tag = 'smem constant byte address 0x4 - core index']
  #allocation1 [shape = 'u32[144,128]{1,0:T(1,128)}', space=vmem, size = 0x12000, scoped, tag = 'internal scratch']
  %s0 = inlined_call_operand.hbm [shape: f32[2,8,32], index: 0, kind: input, shape index: {}]
  %s1 = inlined_call_operand.hbm [shape: bf16[32,96], index: 1, kind: input, shape index: {}]
  %s2 = inlined_call_operand.vmem [shape: f32[1,96], index: 2, kind: input, shape index: {}]
  %s3 = inlined_call_operand.hbm [shape: f32[2,8,32], index: 3, kind: output, shape index: {}]
  %s4 = sld [smem:[#allocation0]]
  $region30: #{tpu_custom_call.1} parent=0
    _
  %s6 = ssub.s32 1, %s4
  %s7 = scalar_select 0, %s6, %s4
  $region1: #{tpu_custom_call.1} parent=0
    #allocation2 [shape = 'u8[8192]{0}', space=vmem, size = 0x2000, scoped, tag = 'input window, operand 0, single buffered']
    #allocation3 [shape = 's32[1]{0}', space=sflag, size = 0x4, scoped, tag = 'scoped memory for tpu_custom_call.1']
    #allocation4 [shape = 's32[1]{0}', space=sflag, size = 0x4, scoped, tag = 'scoped memory for tpu_custom_call.1']
    #allocation5 [shape = 'u8[8192]{0}', space=vmem, size = 0x2000, scoped, tag = 'input window, operand 1, single buffered']
    #allocation6 [shape = 's32[1]{0}', space=sflag, size = 0x4, scoped, tag = 'scoped memory for tpu_custom_call.1']
    #allocation7 [shape = 'u8[8192]{0}', space=vmem, size = 0x2000, scoped, tag = 'output window, operand 0, single buffered']
    %8 = vsyncpa [#allocation3], 0
    %9 = vsyncpa [#allocation6], 0
    %10 = vsyncpa [#allocation4], 0
    // Predicated region
    $region2: #{tpu_custom_call.1} parent=1 // pred_check
      _
    $region3: #{tpu_custom_call.1} parent=1 // pred_check_branch
      %12 = sbr.rel (0) target = $region5
    $region4: #{tpu_custom_call.1} parent=1 // pred_region
      %s14 = ssub.s32 256, 256
      %15 = vsyncadd [#allocation3], %s14
      %s16 = sshll.u32 [#allocation2], 4
      %s17 = int_to_ptr.vmem [resolvable:$true] %s16
      %22 = dma.hbm_to_vmem [thread:$0]  %s0, 256, %s17, [#allocation3], 128, 128, 8
    $region5: #{tpu_custom_call.1} parent=1 // pred_fallthru
      _
    // Predicated region
    $region6: #{tpu_custom_call.1} parent=1 // pred_check
      _
    $region7: #{tpu_custom_call.1} parent=1 // pred_check_branch
      %24 = sbr.rel (0) target = $region9
    $region8: #{tpu_custom_call.1} parent=1 // pred_region
      %s26 = ssub.s32 256, 256
      %27 = vsyncadd [#allocation6], %s26
      %s28 = sshll.u32 [#allocation5], 4
      %s29 = int_to_ptr.vmem [resolvable:$true] %s28
      %34 = dma.hbm_to_vmem [thread:$0]  %s1, 256, %s29, [#allocation6], 64, 64, 4
    $region9: #{tpu_custom_call.1} parent=1 // pred_fallthru
      _
    // Predicated region
    $region10: #{tpu_custom_call.1} parent=1 // pred_check
      _
    $region11: #{tpu_custom_call.1} parent=1 // pred_check_branch
      %36 = sbr.rel (0) target = $region13
    $region12: #{tpu_custom_call.1} parent=1 // pred_region
      _
    $region13: #{tpu_custom_call.1} parent=1 // pred_fallthru
      _
    // Predicated region
    $region14: #{tpu_custom_call.1} parent=1 // pred_check
      _
    $region15: #{tpu_custom_call.1} parent=1 // pred_check_branch
      %38 = sbr.rel (0) target = $region17
    $region16: #{tpu_custom_call.1} parent=1 // pred_region
      %39 = dma.done [#allocation3], 256
    $region17: #{tpu_custom_call.1} parent=1 // pred_fallthru
      _
    // Predicated region
    $region18: #{tpu_custom_call.1} parent=1 // pred_check
      _
    $region19: #{tpu_custom_call.1} parent=1 // pred_check_branch
      %41 = sbr.rel (0) target = $region21
    $region20: #{tpu_custom_call.1} parent=1 // pred_region
      %42 = dma.done [#allocation6], 256
    $region21: #{tpu_custom_call.1} parent=1 // pred_fallthru
      _
    %v44 = vld [vmem:[#allocation2] sm:$0xff]
    %v45 = vld [vmem:[#allocation2 + $0x8] sm:$0xff]
    %v46 = vpack.c.bf16 %v45, %v44
    %v47 = vld [vmem:[#allocation5] sm:$0xf]
    %v48 = vld [vmem:[#allocation5 + $0x4] sm:$0xf]
    %v49 = vld [vmem:[#allocation5 + $0x8] sm:$0xf]
    %v50 = vld [vmem:[#allocation5 + $0xc] sm:$0xf]
    %v51 = vld [vmem:[%s2] sm:$0x1]
    %v53 = vlaneseq
    %v54 = vshrl.u32 %v53, 7
    %v55 = vsub.s32 0, %v54
    %v56 = vrot.slane %v51, %v55
    %v62 = vunpack.c.l.b16 %v47
    %v63 = vunpack.c.l.b16 %v48
    %v64 = vunpack.c.l.b16 %v49
    %v65 = vunpack.c.l.b16 %v50
    %v66 = vpack.c.b16 %v63, %v62
    %v67 = vpack.c.b16 %v65, %v64
    %vm70 = vcmask 261120
    %v72 = vsel %vm70, %v46, 0
    %74 = vmatprep.subr.bf16.mxu0 0
    %75 = vmatpush1.bf16.msra.mxu0 %v66
    %76 = vmatprep.subr.bf16.mxu0 0
    %77 = vmatpush1.bf16.msra.mxu0 %v67
    %78 = vmatprep.subr.bf16.mxu0 0
    %79 = vmatpush1.bf16.msra.mxu0 0
    %80 = vmatprep.subr.bf16.mxu0 0
    %81 = vmatpush1.bf16.msra.mxu0 0
    %82 = vmatprep.subr.bf16.mxu0 0
    %83 = vmatpush1.bf16.msra.mxu0 0
    %84 = vmatprep.subr.bf16.mxu0 0
    %85 = vmatpush1.bf16.msra.mxu0 0
    %86 = vmatprep.subr.bf16.mxu0 0
    %87 = vmatpush1.bf16.msra.mxu0 0
    %88 = vmatprep.subr.bf16.mxu0 0
    %89 = vmatpush1.bf16.msra.mxu0 0
    %90 = vmatprep.subr.bf16.mxu0 0
    %91 = vmatpush1.bf16.msra.mxu0 0
    %92 = vmatprep.subr.bf16.mxu0 0
    %93 = vmatpush1.bf16.msra.mxu0 0
    %94 = vmatprep.subr.bf16.mxu0 0
    %95 = vmatpush1.bf16.msra.mxu0 0
    %96 = vmatprep.subr.bf16.mxu0 0
    %97 = vmatpush1.bf16.msra.mxu0 0
    %98 = vmatprep.subr.bf16.mxu0 0
    %99 = vmatpush1.bf16.msra.mxu0 0
    %100 = vmatprep.subr.bf16.mxu0 0
    %101 = vmatpush1.bf16.msra.mxu0 0
    %102 = vmatprep.subr.bf16.mxu0 0
    %103 = vmatpush1.bf16.msra.mxu0 0
    %104 = vmatprep.subr.bf16.mxu0 0
    %105 = vmatpush1.bf16.msra.mxu0 0
    %106 = vmatprep.mubr.bf16.mxu0 0
    %107 = vmatmul.mubr.bf16.gmra.mrb[0].mxu0 %v72
    %v108 = vpop.f32.mrb[0].mxu0
    %v109 = vadd.f32 %v56, %v108
    %v110 = vpop.f32.mrb[0].mxu0
    %v111 = vpop.f32.mrb[0].mxu0
    %v112 = vadd.f32 %v56, %v111
    %v113 = vpop.f32.mrb[0].mxu0
    %114 = vdwg.mxu0
    %v115 = vpack.c.bf16 %v112, %v109
    %v117 = vunpack.c.l.b16 %v115
    %v118 = vunpack.c.h.b16 %v115
    %v119 = vpack.c.b16 %v117, %v117
    %v120 = vpack.c.b16 %v118, %v118
    %121 = vrot.lane.b32.xlu0 %v119, 120
    %v122 = vpop.permute.xlu0 %121
    %vm123 = vcmask 64512
    %v125 = vsel %vm123, %v119, 0
    %v128 = vsel %vm123, %v122, 0
    %130 = vmatprep.subr.bf16.mxu0 0
    %131 = vmatpush1.bf16.xpose.msra.mxu0 %v128
    %132 = vmatprep.subr.bf16.mxu0 0
    %133 = vmatpush1.bf16.xpose.msra.mxu0 0
    %134 = vmatprep.subr.bf16.mxu0 0
    %135 = vmatpush1.bf16.xpose.msra.mxu0 0
    %136 = vmatprep.subr.bf16.mxu0 0
    %137 = vmatpush1.bf16.xpose.msra.mxu0 0
    %138 = vmatprep.subr.bf16.mxu0 0
    %139 = vmatpush1.bf16.xpose.msra.mxu0 0
    %140 = vmatprep.subr.bf16.mxu0 0
    %141 = vmatpush1.bf16.xpose.msra.mxu0 0
    %142 = vmatprep.subr.bf16.mxu0 0
    %143 = vmatpush1.bf16.xpose.msra.mxu0 0
    %144 = vmatprep.subr.bf16.mxu0 0
    %145 = vmatpush1.bf16.xpose.msra.mxu0 0
    %146 = vmatprep.subr.bf16.mxu0 0
    %147 = vmatpush1.bf16.xpose.msra.mxu0 0
    %148 = vmatprep.subr.bf16.mxu0 0
    %149 = vmatpush1.bf16.xpose.msra.mxu0 0
    %150 = vmatprep.subr.bf16.mxu0 0
    %151 = vmatpush1.bf16.xpose.msra.mxu0 0
    %152 = vmatprep.subr.bf16.mxu0 0
    %153 = vmatpush1.bf16.xpose.msra.mxu0 0
    %154 = vmatprep.subr.bf16.mxu0 0
    %155 = vmatpush1.bf16.xpose.msra.mxu0 0
    %156 = vmatprep.subr.bf16.mxu0 0
    %157 = vmatpush1.bf16.xpose.msra.mxu0 0
    %158 = vmatprep.subr.bf16.mxu0 0
    %159 = vmatpush1.bf16.xpose.msra.mxu0 0
    %160 = vmatprep.subr.bf16.mxu0 0
    %161 = vmatpush1.bf16.xpose.msra.mxu0 0
    %162 = vmatprep.mubr.bf16.mxu0 0
    %163 = vmatmul.mubr.bf16.gmra.mrb[0].mxu0 %v125
    %v164 = vpop.f32.mrb[0].mxu0
    %v165 = vadd.f32 0.0, %v164
    %v166 = vpop.f32.mrb[0].mxu0
    %v167 = vpop.f32.mrb[0].mxu0
    %v168 = vpop.f32.mrb[0].mxu0
    %169 = vdwg.mxu0
    %v170 = vsel %vm123, %v165, -inf
    %171 = vmax.xlane.f32.xlu0 %v170
    %v172 = vpop.xlane.xlu0 %171
    %v173 = vsub.f32 %v165, %v172
    %v174 = vmul.f32 %v173, 1.442695
    %v175 = vpow.pop %v174
    %v176 = vsel %vm123, %v175, 0.0
    %177 = vadd.xlane.f32.xlu0 %v176
    %v178 = vpop.xlane.xlu0 %177
    %v179 = vrcp.pop %v178
    %v180 = vpack.c.bf16 %v175, %v175
    %181 = vrot.lane.b32.xlu0 %v119, 112
    %v182 = vpop.permute.xlu0 %181
    %v184 = vsel %vm123, %v180, 0
    %vm186 = vcmask 1043456
    %v188 = vsel %vm186, %v182, 0
    %190 = vmatprep.subr.bf16.mxu0 0
    %191 = vmatpush1.bf16.msra.mxu0 %v188
    %192 = vmatprep.subr.bf16.mxu0 0
    %193 = vmatpush1.bf16.msra.mxu0 0
    %194 = vmatprep.subr.bf16.mxu0 0
    %195 = vmatpush1.bf16.msra.mxu0 0
    %196 = vmatprep.subr.bf16.mxu0 0
    %197 = vmatpush1.bf16.msra.mxu0 0
    %198 = vmatprep.subr.bf16.mxu0 0
    %199 = vmatpush1.bf16.msra.mxu0 0
    %200 = vmatprep.subr.bf16.mxu0 0
    %201 = vmatpush1.bf16.msra.mxu0 0
    %202 = vmatprep.subr.bf16.mxu0 0
    %203 = vmatpush1.bf16.msra.mxu0 0
    %204 = vmatprep.subr.bf16.mxu0 0
    %205 = vmatpush1.bf16.msra.mxu0 0
    %206 = vmatprep.subr.bf16.mxu0 0
    %207 = vmatpush1.bf16.msra.mxu0 0
    %208 = vmatprep.subr.bf16.mxu0 0
    %209 = vmatpush1.bf16.msra.mxu0 0
    %210 = vmatprep.subr.bf16.mxu0 0
    %211 = vmatpush1.bf16.msra.mxu0 0
    %212 = vmatprep.subr.bf16.mxu0 0
    %213 = vmatpush1.bf16.msra.mxu0 0
    %214 = vmatprep.subr.bf16.mxu0 0
    %215 = vmatpush1.bf16.msra.mxu0 0
    %216 = vmatprep.subr.bf16.mxu0 0
    %217 = vmatpush1.bf16.msra.mxu0 0
    %218 = vmatprep.subr.bf16.mxu0 0
    %219 = vmatpush1.bf16.msra.mxu0 0
    %220 = vmatprep.subr.bf16.mxu0 0
    %221 = vmatpush1.bf16.msra.mxu0 0
    %222 = vmatprep.mubr.bf16.mxu0 0
    %223 = vmatmul.mubr.bf16.gmra.mrb[0].mxu0 %v184
    %v224 = vpop.f32.mrb[0].mxu0
    %v225 = vadd.f32 0.0, %v224
    %v226 = vpop.f32.mrb[0].mxu0
    %v227 = vpop.f32.mrb[0].mxu0
    %v228 = vpop.f32.mrb[0].mxu0
    %229 = vdwg.mxu0
    %v230 = vmul.f32 %v225, %v179
    %231 = vst.msk [vmem:[#allocation7] sm:$0xff] %vm123, %v230
    %232 = vrot.lane.b32.xlu0 %v119, 104
    %v233 = vpop.permute.xlu0 %232
    %234 = vrot.lane.b32.xlu0 %v119, 96
    %v235 = vpop.permute.xlu0 %234
    %v237 = vsel %vm123, %v233, 0
    %v240 = vsel %vm123, %v235, 0
    %242 = vmatprep.subr.bf16.mxu0 0
    %243 = vmatpush1.bf16.xpose.msra.mxu0 %v240
    %244 = vmatprep.subr.bf16.mxu0 0
    %245 = vmatpush1.bf16.xpose.msra.mxu0 0
    %246 = vmatprep.subr.bf16.mxu0 0
    %247 = vmatpush1.bf16.xpose.msra.mxu0 0
    %248 = vmatprep.subr.bf16.mxu0 0
    %249 = vmatpush1.bf16.xpose.msra.mxu0 0
    %250 = vmatprep.subr.bf16.mxu0 0
    %251 = vmatpush1.bf16.xpose.msra.mxu0 0
    %252 = vmatprep.subr.bf16.mxu0 0
    %253 = vmatpush1.bf16.xpose.msra.mxu0 0
    %254 = vmatprep.subr.bf16.mxu0 0
    %255 = vmatpush1.bf16.xpose.msra.mxu0 0
    %256 = vmatprep.subr.bf16.mxu0 0
    %257 = vmatpush1.bf16.xpose.msra.mxu0 0
    %258 = vmatprep.subr.bf16.mxu0 0
    %259 = vmatpush1.bf16.xpose.msra.mxu0 0
    %260 = vmatprep.subr.bf16.mxu0 0
    %261 = vmatpush1.bf16.xpose.msra.mxu0 0
    %262 = vmatprep.subr.bf16.mxu0 0
    %263 = vmatpush1.bf16.xpose.msra.mxu0 0
    %264 = vmatprep.subr.bf16.mxu0 0
    %265 = vmatpush1.bf16.xpose.msra.mxu0 0
    %266 = vmatprep.subr.bf16.mxu0 0
    %267 = vmatpush1.bf16.xpose.msra.mxu0 0
    %268 = vmatprep.subr.bf16.mxu0 0
    %269 = vmatpush1.bf16.xpose.msra.mxu0 0
    %270 = vmatprep.subr.bf16.mxu0 0
    %271 = vmatpush1.bf16.xpose.msra.mxu0 0
    %272 = vmatprep.subr.bf16.mxu0 0
    %273 = vmatpush1.bf16.xpose.msra.mxu0 0
    %274 = vmatprep.mubr.bf16.mxu0 0
    %275 = vmatmul.mubr.bf16.gmra.mrb[0].mxu0 %v237
    %v276 = vpop.f32.mrb[0].mxu0
    %v277 = vadd.f32 0.0, %v276
    %v278 = vpop.f32.mrb[0].mxu0
    %v279 = vpop.f32.mrb[0].mxu0
    %v280 = vpop.f32.mrb[0].mxu0
    %281 = vdwg.mxu0
    %v282 = vsel %vm123, %v277, -inf
    %283 = vmax.xlane.f32.xlu0 %v282
    %v284 = vpop.xlane.xlu0 %283
    %v285 = vsub.f32 %v277, %v284
    %v286 = vmul.f32 %v285, 1.442695
    %v287 = vpow.pop %v286
    %v288 = vsel %vm123, %v287, 0.0
    %289 = vadd.xlane.f32.xlu0 %v288
    %v290 = vpop.xlane.xlu0 %289
    %v291 = vrcp.pop %v290
    %v292 = vpack.c.bf16 %v287, %v287
    %293 = vrot.lane.b32.xlu0 %v119, 88
    %v294 = vpop.permute.xlu0 %293
    %v296 = vsel %vm123, %v292, 0
    %v299 = vsel %vm186, %v294, 0
    %301 = vmatprep.subr.bf16.mxu0 0
    %302 = vmatpush1.bf16.msra.mxu0 %v299
    %303 = vmatprep.subr.bf16.mxu0 0
    %304 = vmatpush1.bf16.msra.mxu0 0
    %305 = vmatprep.subr.bf16.mxu0 0
    %306 = vmatpush1.bf16.msra.mxu0 0
    %307 = vmatprep.subr.bf16.mxu0 0
    %308 = vmatpush1.bf16.msra.mxu0 0
    %309 = vmatprep.subr.bf16.mxu0 0
    %310 = vmatpush1.bf16.msra.mxu0 0
    %311 = vmatprep.subr.bf16.mxu0 0
    %312 = vmatpush1.bf16.msra.mxu0 0
    %313 = vmatprep.subr.bf16.mxu0 0
    %314 = vmatpush1.bf16.msra.mxu0 0
    %315 = vmatprep.subr.bf16.mxu0 0
    %316 = vmatpush1.bf16.msra.mxu0 0
    %317 = vmatprep.subr.bf16.mxu0 0
    %318 = vmatpush1.bf16.msra.mxu0 0
    %319 = vmatprep.subr.bf16.mxu0 0
    %320 = vmatpush1.bf16.msra.mxu0 0
    %321 = vmatprep.subr.bf16.mxu0 0
    %322 = vmatpush1.bf16.msra.mxu0 0
    %323 = vmatprep.subr.bf16.mxu0 0
    %324 = vmatpush1.bf16.msra.mxu0 0
    %325 = vmatprep.subr.bf16.mxu0 0
    %326 = vmatpush1.bf16.msra.mxu0 0
    %327 = vmatprep.subr.bf16.mxu0 0
    %328 = vmatpush1.bf16.msra.mxu0 0
    %329 = vmatprep.subr.bf16.mxu0 0
    %330 = vmatpush1.bf16.msra.mxu0 0
    %331 = vmatprep.subr.bf16.mxu0 0
    %332 = vmatpush1.bf16.msra.mxu0 0
    %333 = vmatprep.mubr.bf16.mxu0 0
    %334 = vmatmul.mubr.bf16.gmra.mrb[0].mxu0 %v296
    %v335 = vpop.f32.mrb[0].mxu0
    %v336 = vadd.f32 0.0, %v335
    %v337 = vpop.f32.mrb[0].mxu0
    %v338 = vpop.f32.mrb[0].mxu0
    %v339 = vpop.f32.mrb[0].mxu0
    %340 = vdwg.mxu0
    %v341 = vmul.f32 %v336, %v291
    %343 = vrot.lane.b32.xlu0 %v341, 8
    %v344 = vpop.permute.xlu0 %343
    %vm346 = vcmask 130112
    %347 = vst.msk [vmem:[#allocation7] sm:$0xff] %vm346, %v344
    %348 = vrot.lane.b32.xlu0 %v119, 80
    %v349 = vpop.permute.xlu0 %348
    %350 = vrot.lane.b32.xlu0 %v119, 72
    %v351 = vpop.permute.xlu0 %350
    %v353 = vsel %vm123, %v349, 0
    %v356 = vsel %vm123, %v351, 0
    %358 = vmatprep.subr.bf16.mxu0 0
    %359 = vmatpush1.bf16.xpose.msra.mxu0 %v356
    %360 = vmatprep.subr.bf16.mxu0 0
    %361 = vmatpush1.bf16.xpose.msra.mxu0 0
    %362 = vmatprep.subr.bf16.mxu0 0
    %363 = vmatpush1.bf16.xpose.msra.mxu0 0
    %364 = vmatprep.subr.bf16.mxu0 0
    %365 = vmatpush1.bf16.xpose.msra.mxu0 0
    %366 = vmatprep.subr.bf16.mxu0 0
    %367 = vmatpush1.bf16.xpose.msra.mxu0 0
    %368 = vmatprep.subr.bf16.mxu0 0
    %369 = vmatpush1.bf16.xpose.msra.mxu0 0
    %370 = vmatprep.subr.bf16.mxu0 0
    %371 = vmatpush1.bf16.xpose.msra.mxu0 0
    %372 = vmatprep.subr.bf16.mxu0 0
    %373 = vmatpush1.bf16.xpose.msra.mxu0 0
    %374 = vmatprep.subr.bf16.mxu0 0
    %375 = vmatpush1.bf16.xpose.msra.mxu0 0
    %376 = vmatprep.subr.bf16.mxu0 0
    %377 = vmatpush1.bf16.xpose.msra.mxu0 0
    %378 = vmatprep.subr.bf16.mxu0 0
    %379 = vmatpush1.bf16.xpose.msra.mxu0 0
    %380 = vmatprep.subr.bf16.mxu0 0
    %381 = vmatpush1.bf16.xpose.msra.mxu0 0
    %382 = vmatprep.subr.bf16.mxu0 0
    %383 = vmatpush1.bf16.xpose.msra.mxu0 0
    %384 = vmatprep.subr.bf16.mxu0 0
    %385 = vmatpush1.bf16.xpose.msra.mxu0 0
    %386 = vmatprep.subr.bf16.mxu0 0
    %387 = vmatpush1.bf16.xpose.msra.mxu0 0
    %388 = vmatprep.subr.bf16.mxu0 0
    %389 = vmatpush1.bf16.xpose.msra.mxu0 0
    %390 = vmatprep.mubr.bf16.mxu0 0
    %391 = vmatmul.mubr.bf16.gmra.mrb[0].mxu0 %v353
    %v392 = vpop.f32.mrb[0].mxu0
    %v393 = vadd.f32 0.0, %v392
    %v394 = vpop.f32.mrb[0].mxu0
    %v395 = vpop.f32.mrb[0].mxu0
    %v396 = vpop.f32.mrb[0].mxu0
    %397 = vdwg.mxu0
    %v398 = vsel %vm123, %v393, -inf
    %399 = vmax.xlane.f32.xlu0 %v398
    %v400 = vpop.xlane.xlu0 %399
    %v401 = vsub.f32 %v393, %v400
    %v402 = vmul.f32 %v401, 1.442695
    %v403 = vpow.pop %v402
    %v404 = vsel %vm123, %v403, 0.0
    %405 = vadd.xlane.f32.xlu0 %v404
    %v406 = vpop.xlane.xlu0 %405
    %v407 = vrcp.pop %v406
    %v408 = vpack.c.bf16 %v403, %v403
    %409 = vrot.lane.b32.xlu0 %v119, 64
    %v410 = vpop.permute.xlu0 %409
    %v412 = vsel %vm123, %v408, 0
    %v415 = vsel %vm186, %v410, 0
    %417 = vmatprep.subr.bf16.mxu0 0
    %418 = vmatpush1.bf16.msra.mxu0 %v415
    %419 = vmatprep.subr.bf16.mxu0 0
    %420 = vmatpush1.bf16.msra.mxu0 0
    %421 = vmatprep.subr.bf16.mxu0 0
    %422 = vmatpush1.bf16.msra.mxu0 0
    %423 = vmatprep.subr.bf16.mxu0 0
    %424 = vmatpush1.bf16.msra.mxu0 0
    %425 = vmatprep.subr.bf16.mxu0 0
    %426 = vmatpush1.bf16.msra.mxu0 0
    %427 = vmatprep.subr.bf16.mxu0 0
    %428 = vmatpush1.bf16.msra.mxu0 0
    %429 = vmatprep.subr.bf16.mxu0 0
    %430 = vmatpush1.bf16.msra.mxu0 0
    %431 = vmatprep.subr.bf16.mxu0 0
    %432 = vmatpush1.bf16.msra.mxu0 0
    %433 = vmatprep.subr.bf16.mxu0 0
    %434 = vmatpush1.bf16.msra.mxu0 0
    %435 = vmatprep.subr.bf16.mxu0 0
    %436 = vmatpush1.bf16.msra.mxu0 0
    %437 = vmatprep.subr.bf16.mxu0 0
    %438 = vmatpush1.bf16.msra.mxu0 0
    %439 = vmatprep.subr.bf16.mxu0 0
    %440 = vmatpush1.bf16.msra.mxu0 0
    %441 = vmatprep.subr.bf16.mxu0 0
    %442 = vmatpush1.bf16.msra.mxu0 0
    %443 = vmatprep.subr.bf16.mxu0 0
    %444 = vmatpush1.bf16.msra.mxu0 0
    %445 = vmatprep.subr.bf16.mxu0 0
    %446 = vmatpush1.bf16.msra.mxu0 0
    %447 = vmatprep.subr.bf16.mxu0 0
    %448 = vmatpush1.bf16.msra.mxu0 0
    %449 = vmatprep.mubr.bf16.mxu0 0
    %450 = vmatmul.mubr.bf16.gmra.mrb[0].mxu0 %v412
    %v451 = vpop.f32.mrb[0].mxu0
    %v452 = vadd.f32 0.0, %v451
    %v453 = vpop.f32.mrb[0].mxu0
    %v454 = vpop.f32.mrb[0].mxu0
    %v455 = vpop.f32.mrb[0].mxu0
    %456 = vdwg.mxu0
    %v457 = vmul.f32 %v452, %v407
    %459 = vrot.lane.b32.xlu0 %v457, 16
    %v460 = vpop.permute.xlu0 %459
    %vm462 = vcmask 195712
    %463 = vst.msk [vmem:[#allocation7] sm:$0xff] %vm462, %v460
    %464 = vrot.lane.b32.xlu0 %v119, 56
    %v465 = vpop.permute.xlu0 %464
    %466 = vrot.lane.b32.xlu0 %v119, 48
    %v467 = vpop.permute.xlu0 %466
    %v469 = vsel %vm123, %v465, 0
    %v472 = vsel %vm123, %v467, 0
    %474 = vmatprep.subr.bf16.mxu0 0
    %475 = vmatpush1.bf16.xpose.msra.mxu0 %v472
    %476 = vmatprep.subr.bf16.mxu0 0
    %477 = vmatpush1.bf16.xpose.msra.mxu0 0
    %478 = vmatprep.subr.bf16.mxu0 0
    %479 = vmatpush1.bf16.xpose.msra.mxu0 0
    %480 = vmatprep.subr.bf16.mxu0 0
    %481 = vmatpush1.bf16.xpose.msra.mxu0 0
    %482 = vmatprep.subr.bf16.mxu0 0
    %483 = vmatpush1.bf16.xpose.msra.mxu0 0
    %484 = vmatprep.subr.bf16.mxu0 0
    %485 = vmatpush1.bf16.xpose.msra.mxu0 0
    %486 = vmatprep.subr.bf16.mxu0 0
    %487 = vmatpush1.bf16.xpose.msra.mxu0 0
    %488 = vmatprep.subr.bf16.mxu0 0
    %489 = vmatpush1.bf16.xpose.msra.mxu0 0
    %490 = vmatprep.subr.bf16.mxu0 0
    %491 = vmatpush1.bf16.xpose.msra.mxu0 0
    %492 = vmatprep.subr.bf16.mxu0 0
    %493 = vmatpush1.bf16.xpose.msra.mxu0 0
    %494 = vmatprep.subr.bf16.mxu0 0
    %495 = vmatpush1.bf16.xpose.msra.mxu0 0
    %496 = vmatprep.subr.bf16.mxu0 0
    %497 = vmatpush1.bf16.xpose.msra.mxu0 0
    %498 = vmatprep.subr.bf16.mxu0 0
    %499 = vmatpush1.bf16.xpose.msra.mxu0 0
    %500 = vmatprep.subr.bf16.mxu0 0
    %501 = vmatpush1.bf16.xpose.msra.mxu0 0
    %502 = vmatprep.subr.bf16.mxu0 0
    %503 = vmatpush1.bf16.xpose.msra.mxu0 0
    %504 = vmatprep.subr.bf16.mxu0 0
    %505 = vmatpush1.bf16.xpose.msra.mxu0 0
    %506 = vmatprep.mubr.bf16.mxu0 0
    %507 = vmatmul.mubr.bf16.gmra.mrb[0].mxu0 %v469
    %v508 = vpop.f32.mrb[0].mxu0
    %v509 = vadd.f32 0.0, %v508
    %v510 = vpop.f32.mrb[0].mxu0
    %v511 = vpop.f32.mrb[0].mxu0
    %v512 = vpop.f32.mrb[0].mxu0
    %513 = vdwg.mxu0
    %v514 = vsel %vm123, %v509, -inf
    %515 = vmax.xlane.f32.xlu0 %v514
    %v516 = vpop.xlane.xlu0 %515
    %v517 = vsub.f32 %v509, %v516
    %v518 = vmul.f32 %v517, 1.442695
    %v519 = vpow.pop %v518
    %v520 = vsel %vm123, %v519, 0.0
    %521 = vadd.xlane.f32.xlu0 %v520
    %v522 = vpop.xlane.xlu0 %521
    %v523 = vrcp.pop %v522
    %v524 = vpack.c.bf16 %v519, %v519
    %525 = vrot.lane.b32.xlu0 %v119, 40
    %v526 = vpop.permute.xlu0 %525
    %v528 = vsel %vm123, %v524, 0
    %v531 = vsel %vm186, %v526, 0
    %533 = vmatprep.subr.bf16.mxu0 0
    %534 = vmatpush1.bf16.msra.mxu0 %v531
    %535 = vmatprep.subr.bf16.mxu0 0
    %536 = vmatpush1.bf16.msra.mxu0 0
    %537 = vmatprep.subr.bf16.mxu0 0
    %538 = vmatpush1.bf16.msra.mxu0 0
    %539 = vmatprep.subr.bf16.mxu0 0
    %540 = vmatpush1.bf16.msra.mxu0 0
    %541 = vmatprep.subr.bf16.mxu0 0
    %542 = vmatpush1.bf16.msra.mxu0 0
    %543 = vmatprep.subr.bf16.mxu0 0
    %544 = vmatpush1.bf16.msra.mxu0 0
    %545 = vmatprep.subr.bf16.mxu0 0
    %546 = vmatpush1.bf16.msra.mxu0 0
    %547 = vmatprep.subr.bf16.mxu0 0
    %548 = vmatpush1.bf16.msra.mxu0 0
    %549 = vmatprep.subr.bf16.mxu0 0
    %550 = vmatpush1.bf16.msra.mxu0 0
    %551 = vmatprep.subr.bf16.mxu0 0
    %552 = vmatpush1.bf16.msra.mxu0 0
    %553 = vmatprep.subr.bf16.mxu0 0
    %554 = vmatpush1.bf16.msra.mxu0 0
    %555 = vmatprep.subr.bf16.mxu0 0
    %556 = vmatpush1.bf16.msra.mxu0 0
    %557 = vmatprep.subr.bf16.mxu0 0
    %558 = vmatpush1.bf16.msra.mxu0 0
    %559 = vmatprep.subr.bf16.mxu0 0
    %560 = vmatpush1.bf16.msra.mxu0 0
    %561 = vmatprep.subr.bf16.mxu0 0
    %562 = vmatpush1.bf16.msra.mxu0 0
    %563 = vmatprep.subr.bf16.mxu0 0
    %564 = vmatpush1.bf16.msra.mxu0 0
    %565 = vmatprep.mubr.bf16.mxu0 0
    %566 = vmatmul.mubr.bf16.gmra.mrb[0].mxu0 %v528
    %v567 = vpop.f32.mrb[0].mxu0
    %v568 = vadd.f32 0.0, %v567
    %v569 = vpop.f32.mrb[0].mxu0
    %v570 = vpop.f32.mrb[0].mxu0
    %v571 = vpop.f32.mrb[0].mxu0
    %572 = vdwg.mxu0
    %v573 = vmul.f32 %v568, %v523
    %575 = vrot.lane.b32.xlu0 %v573, 24
    %v576 = vpop.permute.xlu0 %575
    %vm578 = vcmask 261312
    %579 = vst.msk [vmem:[#allocation7] sm:$0xff] %vm578, %v576
    %580 = vrot.lane.b32.xlu0 %v120, 120
    %v581 = vpop.permute.xlu0 %580
    %v583 = vsel %vm123, %v120, 0
    %v586 = vsel %vm123, %v581, 0
    %588 = vmatprep.subr.bf16.mxu0 0
    %589 = vmatpush1.bf16.xpose.msra.mxu0 %v586
    %590 = vmatprep.subr.bf16.mxu0 0
    %591 = vmatpush1.bf16.xpose.msra.mxu0 0
    %592 = vmatprep.subr.bf16.mxu0 0
    %593 = vmatpush1.bf16.xpose.msra.mxu0 0
    %594 = vmatprep.subr.bf16.mxu0 0
    %595 = vmatpush1.bf16.xpose.msra.mxu0 0
    %596 = vmatprep.subr.bf16.mxu0 0
    %597 = vmatpush1.bf16.xpose.msra.mxu0 0
    %598 = vmatprep.subr.bf16.mxu0 0
    %599 = vmatpush1.bf16.xpose.msra.mxu0 0
    %600 = vmatprep.subr.bf16.mxu0 0
    %601 = vmatpush1.bf16.xpose.msra.mxu0 0
    %602 = vmatprep.subr.bf16.mxu0 0
    %603 = vmatpush1.bf16.xpose.msra.mxu0 0
    %604 = vmatprep.subr.bf16.mxu0 0
    %605 = vmatpush1.bf16.xpose.msra.mxu0 0
    %606 = vmatprep.subr.bf16.mxu0 0
    %607 = vmatpush1.bf16.xpose.msra.mxu0 0
    %608 = vmatprep.subr.bf16.mxu0 0
    %609 = vmatpush1.bf16.xpose.msra.mxu0 0
    %610 = vmatprep.subr.bf16.mxu0 0
    %611 = vmatpush1.bf16.xpose.msra.mxu0 0
    %612 = vmatprep.subr.bf16.mxu0 0
    %613 = vmatpush1.bf16.xpose.msra.mxu0 0
    %614 = vmatprep.subr.bf16.mxu0 0
    %615 = vmatpush1.bf16.xpose.msra.mxu0 0
    %616 = vmatprep.subr.bf16.mxu0 0
    %617 = vmatpush1.bf16.xpose.msra.mxu0 0
    %618 = vmatprep.subr.bf16.mxu0 0
    %619 = vmatpush1.bf16.xpose.msra.mxu0 0
    %620 = vmatprep.mubr.bf16.mxu0 0
    %621 = vmatmul.mubr.bf16.gmra.mrb[0].mxu0 %v583
    %v622 = vpop.f32.mrb[0].mxu0
    %v623 = vadd.f32 0.0, %v622
    %v624 = vpop.f32.mrb[0].mxu0
    %v625 = vpop.f32.mrb[0].mxu0
    %v626 = vpop.f32.mrb[0].mxu0
    %627 = vdwg.mxu0
    %v628 = vsel %vm123, %v623, -inf
    %629 = vmax.xlane.f32.xlu0 %v628
    %v630 = vpop.xlane.xlu0 %629
    %v631 = vsub.f32 %v623, %v630
    %v632 = vmul.f32 %v631, 1.442695
    %v633 = vpow.pop %v632
    %v634 = vsel %vm123, %v633, 0.0
    %635 = vadd.xlane.f32.xlu0 %v634
    %v636 = vpop.xlane.xlu0 %635
    %v637 = vrcp.pop %v636
    %v638 = vpack.c.bf16 %v633, %v633
    %639 = vrot.lane.b32.xlu0 %v120, 112
    %v640 = vpop.permute.xlu0 %639
    %v642 = vsel %vm123, %v638, 0
    %v645 = vsel %vm186, %v640, 0
    %647 = vmatprep.subr.bf16.mxu0 0
    %648 = vmatpush1.bf16.msra.mxu0 %v645
    %649 = vmatprep.subr.bf16.mxu0 0
    %650 = vmatpush1.bf16.msra.mxu0 0
    %651 = vmatprep.subr.bf16.mxu0 0
    %652 = vmatpush1.bf16.msra.mxu0 0
    %653 = vmatprep.subr.bf16.mxu0 0
    %654 = vmatpush1.bf16.msra.mxu0 0
    %655 = vmatprep.subr.bf16.mxu0 0
    %656 = vmatpush1.bf16.msra.mxu0 0
    %657 = vmatprep.subr.bf16.mxu0 0
    %658 = vmatpush1.bf16.msra.mxu0 0
    %659 = vmatprep.subr.bf16.mxu0 0
    %660 = vmatpush1.bf16.msra.mxu0 0
    %661 = vmatprep.subr.bf16.mxu0 0
    %662 = vmatpush1.bf16.msra.mxu0 0
    %663 = vmatprep.subr.bf16.mxu0 0
    %664 = vmatpush1.bf16.msra.mxu0 0
    %665 = vmatprep.subr.bf16.mxu0 0
    %666 = vmatpush1.bf16.msra.mxu0 0
    %667 = vmatprep.subr.bf16.mxu0 0
    %668 = vmatpush1.bf16.msra.mxu0 0
    %669 = vmatprep.subr.bf16.mxu0 0
    %670 = vmatpush1.bf16.msra.mxu0 0
    %671 = vmatprep.subr.bf16.mxu0 0
    %672 = vmatpush1.bf16.msra.mxu0 0
    %673 = vmatprep.subr.bf16.mxu0 0
    %674 = vmatpush1.bf16.msra.mxu0 0
    %675 = vmatprep.subr.bf16.mxu0 0
    %676 = vmatpush1.bf16.msra.mxu0 0
    %677 = vmatprep.subr.bf16.mxu0 0
    %678 = vmatpush1.bf16.msra.mxu0 0
    %679 = vmatprep.mubr.bf16.mxu0 0
    %680 = vmatmul.mubr.bf16.gmra.mrb[0].mxu0 %v642
    %v681 = vpop.f32.mrb[0].mxu0
    %v682 = vadd.f32 0.0, %v681
    %v683 = vpop.f32.mrb[0].mxu0
    %v684 = vpop.f32.mrb[0].mxu0
    %v685 = vpop.f32.mrb[0].mxu0
    %686 = vdwg.mxu0
    %v687 = vmul.f32 %v682, %v637
    %s688 = scalar_lea.vmem [#allocation7], 8
    %689 = vst.msk [vmem:[%s688] sm:$0xff] %vm123, %v687
    %690 = vrot.lane.b32.xlu0 %v120, 104
    %v691 = vpop.permute.xlu0 %690
    %692 = vrot.lane.b32.xlu0 %v120, 96
    %v693 = vpop.permute.xlu0 %692
    %v695 = vsel %vm123, %v691, 0
    %v698 = vsel %vm123, %v693, 0
    %700 = vmatprep.subr.bf16.mxu0 0
    %701 = vmatpush1.bf16.xpose.msra.mxu0 %v698
    %702 = vmatprep.subr.bf16.mxu0 0
    %703 = vmatpush1.bf16.xpose.msra.mxu0 0
    %704 = vmatprep.subr.bf16.mxu0 0
    %705 = vmatpush1.bf16.xpose.msra.mxu0 0
    %706 = vmatprep.subr.bf16.mxu0 0
    %707 = vmatpush1.bf16.xpose.msra.mxu0 0
    %708 = vmatprep.subr.bf16.mxu0 0
    %709 = vmatpush1.bf16.xpose.msra.mxu0 0
    %710 = vmatprep.subr.bf16.mxu0 0
    %711 = vmatpush1.bf16.xpose.msra.mxu0 0
    %712 = vmatprep.subr.bf16.mxu0 0
    %713 = vmatpush1.bf16.xpose.msra.mxu0 0
    %714 = vmatprep.subr.bf16.mxu0 0
    %715 = vmatpush1.bf16.xpose.msra.mxu0 0
    %716 = vmatprep.subr.bf16.mxu0 0
    %717 = vmatpush1.bf16.xpose.msra.mxu0 0
    %718 = vmatprep.subr.bf16.mxu0 0
    %719 = vmatpush1.bf16.xpose.msra.mxu0 0
    %720 = vmatprep.subr.bf16.mxu0 0
    %721 = vmatpush1.bf16.xpose.msra.mxu0 0
    %722 = vmatprep.subr.bf16.mxu0 0
    %723 = vmatpush1.bf16.xpose.msra.mxu0 0
    %724 = vmatprep.subr.bf16.mxu0 0
    %725 = vmatpush1.bf16.xpose.msra.mxu0 0
    %726 = vmatprep.subr.bf16.mxu0 0
    %727 = vmatpush1.bf16.xpose.msra.mxu0 0
    %728 = vmatprep.subr.bf16.mxu0 0
    %729 = vmatpush1.bf16.xpose.msra.mxu0 0
    %730 = vmatprep.subr.bf16.mxu0 0
    %731 = vmatpush1.bf16.xpose.msra.mxu0 0
    %732 = vmatprep.mubr.bf16.mxu0 0
    %733 = vmatmul.mubr.bf16.gmra.mrb[0].mxu0 %v695
    %v734 = vpop.f32.mrb[0].mxu0
    %v735 = vadd.f32 0.0, %v734
    %v736 = vpop.f32.mrb[0].mxu0
    %v737 = vpop.f32.mrb[0].mxu0
    %v738 = vpop.f32.mrb[0].mxu0
    %739 = vdwg.mxu0
    %v740 = vsel %vm123, %v735, -inf
    %741 = vmax.xlane.f32.xlu0 %v740
    %v742 = vpop.xlane.xlu0 %741
    %v743 = vsub.f32 %v735, %v742
    %v744 = vmul.f32 %v743, 1.442695
    %v745 = vpow.pop %v744
    %v746 = vsel %vm123, %v745, 0.0
    %747 = vadd.xlane.f32.xlu0 %v746
    %v748 = vpop.xlane.xlu0 %747
    %v749 = vrcp.pop %v748
    %v750 = vpack.c.bf16 %v745, %v745
    %751 = vrot.lane.b32.xlu0 %v120, 88
    %v752 = vpop.permute.xlu0 %751
    %v754 = vsel %vm123, %v750, 0
    %v757 = vsel %vm186, %v752, 0
    %759 = vmatprep.subr.bf16.mxu0 0
    %760 = vmatpush1.bf16.msra.mxu0 %v757
    %761 = vmatprep.subr.bf16.mxu0 0
    %762 = vmatpush1.bf16.msra.mxu0 0
    %763 = vmatprep.subr.bf16.mxu0 0
    %764 = vmatpush1.bf16.msra.mxu0 0
    %765 = vmatprep.subr.bf16.mxu0 0
    %766 = vmatpush1.bf16.msra.mxu0 0
    %767 = vmatprep.subr.bf16.mxu0 0
    %768 = vmatpush1.bf16.msra.mxu0 0
    %769 = vmatprep.subr.bf16.mxu0 0
    %770 = vmatpush1.bf16.msra.mxu0 0
    %771 = vmatprep.subr.bf16.mxu0 0
    %772 = vmatpush1.bf16.msra.mxu0 0
    %773 = vmatprep.subr.bf16.mxu0 0
    %774 = vmatpush1.bf16.msra.mxu0 0
    %775 = vmatprep.subr.bf16.mxu0 0
    %776 = vmatpush1.bf16.msra.mxu0 0
    %777 = vmatprep.subr.bf16.mxu0 0
    %778 = vmatpush1.bf16.msra.mxu0 0
    %779 = vmatprep.subr.bf16.mxu0 0
    %780 = vmatpush1.bf16.msra.mxu0 0
    %781 = vmatprep.subr.bf16.mxu0 0
    %782 = vmatpush1.bf16.msra.mxu0 0
    %783 = vmatprep.subr.bf16.mxu0 0
    %784 = vmatpush1.bf16.msra.mxu0 0
    %785 = vmatprep.subr.bf16.mxu0 0
    %786 = vmatpush1.bf16.msra.mxu0 0
    %787 = vmatprep.subr.bf16.mxu0 0
    %788 = vmatpush1.bf16.msra.mxu0 0
    %789 = vmatprep.subr.bf16.mxu0 0
    %790 = vmatpush1.bf16.msra.mxu0 0
    %791 = vmatprep.mubr.bf16.mxu0 0
    %792 = vmatmul.mubr.bf16.gmra.mrb[0].mxu0 %v754
    %v793 = vpop.f32.mrb[0].mxu0
    %v794 = vadd.f32 0.0, %v793
    %v795 = vpop.f32.mrb[0].mxu0
    %v796 = vpop.f32.mrb[0].mxu0
    %v797 = vpop.f32.mrb[0].mxu0
    %798 = vdwg.mxu0
    %v799 = vmul.f32 %v794, %v749
    %801 = vrot.lane.b32.xlu0 %v799, 8
    %v802 = vpop.permute.xlu0 %801
    %804 = vst.msk [vmem:[%s688] sm:$0xff] %vm346, %v802
    %805 = vrot.lane.b32.xlu0 %v120, 80
    %v806 = vpop.permute.xlu0 %805
    %807 = vrot.lane.b32.xlu0 %v120, 72
    %v808 = vpop.permute.xlu0 %807
    %v810 = vsel %vm123, %v806, 0
    %v813 = vsel %vm123, %v808, 0
    %815 = vmatprep.subr.bf16.mxu0 0
    %816 = vmatpush1.bf16.xpose.msra.mxu0 %v813
    %817 = vmatprep.subr.bf16.mxu0 0
    %818 = vmatpush1.bf16.xpose.msra.mxu0 0
    %819 = vmatprep.subr.bf16.mxu0 0
    %820 = vmatpush1.bf16.xpose.msra.mxu0 0
    %821 = vmatprep.subr.bf16.mxu0 0
    %822 = vmatpush1.bf16.xpose.msra.mxu0 0
    %823 = vmatprep.subr.bf16.mxu0 0
    %824 = vmatpush1.bf16.xpose.msra.mxu0 0
    %825 = vmatprep.subr.bf16.mxu0 0
    %826 = vmatpush1.bf16.xpose.msra.mxu0 0
    %827 = vmatprep.subr.bf16.mxu0 0
    %828 = vmatpush1.bf16.xpose.msra.mxu0 0
    %829 = vmatprep.subr.bf16.mxu0 0
    %830 = vmatpush1.bf16.xpose.msra.mxu0 0
    %831 = vmatprep.subr.bf16.mxu0 0
    %832 = vmatpush1.bf16.xpose.msra.mxu0 0
    %833 = vmatprep.subr.bf16.mxu0 0
    %834 = vmatpush1.bf16.xpose.msra.mxu0 0
    %835 = vmatprep.subr.bf16.mxu0 0
    %836 = vmatpush1.bf16.xpose.msra.mxu0 0
    %837 = vmatprep.subr.bf16.mxu0 0
    %838 = vmatpush1.bf16.xpose.msra.mxu0 0
    %839 = vmatprep.subr.bf16.mxu0 0
    %840 = vmatpush1.bf16.xpose.msra.mxu0 0
    %841 = vmatprep.subr.bf16.mxu0 0
    %842 = vmatpush1.bf16.xpose.msra.mxu0 0
    %843 = vmatprep.subr.bf16.mxu0 0
    %844 = vmatpush1.bf16.xpose.msra.mxu0 0
    %845 = vmatprep.subr.bf16.mxu0 0
    %846 = vmatpush1.bf16.xpose.msra.mxu0 0
    %847 = vmatprep.mubr.bf16.mxu0 0
    %848 = vmatmul.mubr.bf16.gmra.mrb[0].mxu0 %v810
    %v849 = vpop.f32.mrb[0].mxu0
    %v850 = vadd.f32 0.0, %v849
    %v851 = vpop.f32.mrb[0].mxu0
    %v852 = vpop.f32.mrb[0].mxu0
    %v853 = vpop.f32.mrb[0].mxu0
    %854 = vdwg.mxu0
    %v855 = vsel %vm123, %v850, -inf
    %856 = vmax.xlane.f32.xlu0 %v855
    %v857 = vpop.xlane.xlu0 %856
    %v858 = vsub.f32 %v850, %v857
    %v859 = vmul.f32 %v858, 1.442695
    %v860 = vpow.pop %v859
    %v861 = vsel %vm123, %v860, 0.0
    %862 = vadd.xlane.f32.xlu0 %v861
    %v863 = vpop.xlane.xlu0 %862
    %v864 = vrcp.pop %v863
    %v865 = vpack.c.bf16 %v860, %v860
    %866 = vrot.lane.b32.xlu0 %v120, 64
    %v867 = vpop.permute.xlu0 %866
    %v869 = vsel %vm123, %v865, 0
    %v872 = vsel %vm186, %v867, 0
    %874 = vmatprep.subr.bf16.mxu0 0
    %875 = vmatpush1.bf16.msra.mxu0 %v872
    %876 = vmatprep.subr.bf16.mxu0 0
    %877 = vmatpush1.bf16.msra.mxu0 0
    %878 = vmatprep.subr.bf16.mxu0 0
    %879 = vmatpush1.bf16.msra.mxu0 0
    %880 = vmatprep.subr.bf16.mxu0 0
    %881 = vmatpush1.bf16.msra.mxu0 0
    %882 = vmatprep.subr.bf16.mxu0 0
    %883 = vmatpush1.bf16.msra.mxu0 0
    %884 = vmatprep.subr.bf16.mxu0 0
    %885 = vmatpush1.bf16.msra.mxu0 0
    %886 = vmatprep.subr.bf16.mxu0 0
    %887 = vmatpush1.bf16.msra.mxu0 0
    %888 = vmatprep.subr.bf16.mxu0 0
    %889 = vmatpush1.bf16.msra.mxu0 0
    %890 = vmatprep.subr.bf16.mxu0 0
    %891 = vmatpush1.bf16.msra.mxu0 0
    %892 = vmatprep.subr.bf16.mxu0 0
    %893 = vmatpush1.bf16.msra.mxu0 0
    %894 = vmatprep.subr.bf16.mxu0 0
    %895 = vmatpush1.bf16.msra.mxu0 0
    %896 = vmatprep.subr.bf16.mxu0 0
    %897 = vmatpush1.bf16.msra.mxu0 0
    %898 = vmatprep.subr.bf16.mxu0 0
    %899 = vmatpush1.bf16.msra.mxu0 0
    %900 = vmatprep.subr.bf16.mxu0 0
    %901 = vmatpush1.bf16.msra.mxu0 0
    %902 = vmatprep.subr.bf16.mxu0 0
    %903 = vmatpush1.bf16.msra.mxu0 0
    %904 = vmatprep.subr.bf16.mxu0 0
    %905 = vmatpush1.bf16.msra.mxu0 0
    %906 = vmatprep.mubr.bf16.mxu0 0
    %907 = vmatmul.mubr.bf16.gmra.mrb[0].mxu0 %v869
    %v908 = vpop.f32.mrb[0].mxu0
    %v909 = vadd.f32 0.0, %v908
    %v910 = vpop.f32.mrb[0].mxu0
    %v911 = vpop.f32.mrb[0].mxu0
    %v912 = vpop.f32.mrb[0].mxu0
    %913 = vdwg.mxu0
    %v914 = vmul.f32 %v909, %v864
    %916 = vrot.lane.b32.xlu0 %v914, 16
    %v917 = vpop.permute.xlu0 %916
    %919 = vst.msk [vmem:[%s688] sm:$0xff] %vm462, %v917
    %920 = vrot.lane.b32.xlu0 %v120, 56
    %v921 = vpop.permute.xlu0 %920
    %922 = vrot.lane.b32.xlu0 %v120, 48
    %v923 = vpop.permute.xlu0 %922
    %v925 = vsel %vm123, %v921, 0
    %v928 = vsel %vm123, %v923, 0
    %930 = vmatprep.subr.bf16.mxu0 0
    %931 = vmatpush1.bf16.xpose.msra.mxu0 %v928
    %932 = vmatprep.subr.bf16.mxu0 0
    %933 = vmatpush1.bf16.xpose.msra.mxu0 0
    %934 = vmatprep.subr.bf16.mxu0 0
    %935 = vmatpush1.bf16.xpose.msra.mxu0 0
    %936 = vmatprep.subr.bf16.mxu0 0
    %937 = vmatpush1.bf16.xpose.msra.mxu0 0
    %938 = vmatprep.subr.bf16.mxu0 0
    %939 = vmatpush1.bf16.xpose.msra.mxu0 0
    %940 = vmatprep.subr.bf16.mxu0 0
    %941 = vmatpush1.bf16.xpose.msra.mxu0 0
    %942 = vmatprep.subr.bf16.mxu0 0
    %943 = vmatpush1.bf16.xpose.msra.mxu0 0
    %944 = vmatprep.subr.bf16.mxu0 0
    %945 = vmatpush1.bf16.xpose.msra.mxu0 0
    %946 = vmatprep.subr.bf16.mxu0 0
    %947 = vmatpush1.bf16.xpose.msra.mxu0 0
    %948 = vmatprep.subr.bf16.mxu0 0
    %949 = vmatpush1.bf16.xpose.msra.mxu0 0
    %950 = vmatprep.subr.bf16.mxu0 0
    %951 = vmatpush1.bf16.xpose.msra.mxu0 0
    %952 = vmatprep.subr.bf16.mxu0 0
    %953 = vmatpush1.bf16.xpose.msra.mxu0 0
    %954 = vmatprep.subr.bf16.mxu0 0
    %955 = vmatpush1.bf16.xpose.msra.mxu0 0
    %956 = vmatprep.subr.bf16.mxu0 0
    %957 = vmatpush1.bf16.xpose.msra.mxu0 0
    %958 = vmatprep.subr.bf16.mxu0 0
    %959 = vmatpush1.bf16.xpose.msra.mxu0 0
    %960 = vmatprep.subr.bf16.mxu0 0
    %961 = vmatpush1.bf16.xpose.msra.mxu0 0
    %962 = vmatprep.mubr.bf16.mxu0 0
    %963 = vmatmul.mubr.bf16.gmra.mrb[0].mxu0 %v925
    %v964 = vpop.f32.mrb[0].mxu0
    %v965 = vadd.f32 0.0, %v964
    %v966 = vpop.f32.mrb[0].mxu0
    %v967 = vpop.f32.mrb[0].mxu0
    %v968 = vpop.f32.mrb[0].mxu0
    %969 = vdwg.mxu0
    %v970 = vsel %vm123, %v965, -inf
    %971 = vmax.xlane.f32.xlu0 %v970
    %v972 = vpop.xlane.xlu0 %971
    %v973 = vsub.f32 %v965, %v972
    %v974 = vmul.f32 %v973, 1.442695
    %v975 = vpow.pop %v974
    %v976 = vsel %vm123, %v975, 0.0
    %977 = vadd.xlane.f32.xlu0 %v976
    %v978 = vpop.xlane.xlu0 %977
    %v979 = vrcp.pop %v978
    %v980 = vpack.c.bf16 %v975, %v975
    %981 = vrot.lane.b32.xlu0 %v120, 40
    %v982 = vpop.permute.xlu0 %981
    %v984 = vsel %vm123, %v980, 0
    %v987 = vsel %vm186, %v982, 0
    %989 = vmatprep.subr.bf16.mxu0 0
    %990 = vmatpush1.bf16.msra.mxu0 %v987
    %991 = vmatprep.subr.bf16.mxu0 0
    %992 = vmatpush1.bf16.msra.mxu0 0
    %993 = vmatprep.subr.bf16.mxu0 0
    %994 = vmatpush1.bf16.msra.mxu0 0
    %995 = vmatprep.subr.bf16.mxu0 0
    %996 = vmatpush1.bf16.msra.mxu0 0
    %997 = vmatprep.subr.bf16.mxu0 0
    %998 = vmatpush1.bf16.msra.mxu0 0
    %999 = vmatprep.subr.bf16.mxu0 0
    %1000 = vmatpush1.bf16.msra.mxu0 0
    %1001 = vmatprep.subr.bf16.mxu0 0
    %1002 = vmatpush1.bf16.msra.mxu0 0
    %1003 = vmatprep.subr.bf16.mxu0 0
    %1004 = vmatpush1.bf16.msra.mxu0 0
    %1005 = vmatprep.subr.bf16.mxu0 0
    %1006 = vmatpush1.bf16.msra.mxu0 0
    %1007 = vmatprep.subr.bf16.mxu0 0
    %1008 = vmatpush1.bf16.msra.mxu0 0
    %1009 = vmatprep.subr.bf16.mxu0 0
    %1010 = vmatpush1.bf16.msra.mxu0 0
    %1011 = vmatprep.subr.bf16.mxu0 0
    %1012 = vmatpush1.bf16.msra.mxu0 0
    %1013 = vmatprep.subr.bf16.mxu0 0
    %1014 = vmatpush1.bf16.msra.mxu0 0
    %1015 = vmatprep.subr.bf16.mxu0 0
    %1016 = vmatpush1.bf16.msra.mxu0 0
    %1017 = vmatprep.subr.bf16.mxu0 0
    %1018 = vmatpush1.bf16.msra.mxu0 0
    %1019 = vmatprep.subr.bf16.mxu0 0
    %1020 = vmatpush1.bf16.msra.mxu0 0
    %1021 = vmatprep.mubr.bf16.mxu0 0
    %1022 = vmatmul.mubr.bf16.gmra.mrb[0].mxu0 %v984
    %v1023 = vpop.f32.mrb[0].mxu0
    %v1024 = vadd.f32 0.0, %v1023
    %v1025 = vpop.f32.mrb[0].mxu0
    %v1026 = vpop.f32.mrb[0].mxu0
    %v1027 = vpop.f32.mrb[0].mxu0
    %1028 = vdwg.mxu0
    %v1029 = vmul.f32 %v1024, %v979
    %1031 = vrot.lane.b32.xlu0 %v1029, 24
    %v1032 = vpop.permute.xlu0 %1031
    %1034 = vst.msk [vmem:[%s688] sm:$0xff] %vm578, %v1032
    // Predicated region
    $region22: #{tpu_custom_call.1} parent=1 // pred_check
      _
    $region23: #{tpu_custom_call.1} parent=1 // pred_check_branch
      %1036 = sbr.rel (0) target = $region25
    $region24: #{tpu_custom_call.1} parent=1 // pred_region
      %s1038 = ssub.s32 256, 256
      %1039 = vsyncadd [#allocation4], %s1038
      %s1040 = sshll.u32 [#allocation7], 4
      %s1041 = int_to_ptr.vmem [resolvable:$true] %s1040
      %1046 = dma.vmem_to_hbm [thread:$0]  %s1041, 256, %s3, [#allocation4], 128, 128, 8
    $region25: #{tpu_custom_call.1} parent=1 // pred_fallthru
      _
    // Predicated region
    $region26: #{tpu_custom_call.1} parent=1 // pred_check
      _
    $region27: #{tpu_custom_call.1} parent=1 // pred_check_branch
      %1048 = sbr.rel (0) target = $region29
    $region28: #{tpu_custom_call.1} parent=1 // pred_region
      %1049 = dma.done [#allocation4], 256
    $region29: #{tpu_custom_call.1} parent=1 // pred_fallthru
      _
    %1050 = vsyncpa [#allocation3], 1
    %1051 = vsyncpa [#allocation6], 1
    %1052 = vsyncpa [#allocation4], 1

</llo_original>
